<compile_context>
chip_gen: v7x
topology: tpu7x:2x2x1
jax: 0.10.0
libtpu: 0.0.40
codegen_flags: <defaults>
</compile_context>

<pallas_src>
import jax
import jax.numpy as jnp
from jax import lax
from jax.experimental import pallas as pl
from jax.experimental.pallas import tpu as pltpu  # noqa: F401  (TPU backend)

# Small, fixed problem sizes (H == W required because rot90 swaps H/W).
N, CIN, H, W, COUT = 2, 4, 16, 16, 4
M = N * H * W                      # 512  -> lane-dense last dim
KH = KW = 3
NTAPS = KH * KW
KTOT = NTAPS * CIN                 # 36   -> single contraction dim


# ----------------------------- Pallas kernel -------------------------------
def _conv_sigmoid_kernel(wT_ref, taps_ref, b_ref, o_ref):
    # wT_ref:   (COUT, 36)   rotation-averaged weights, transposed
    # taps_ref: (36, M)      im2col taps of the (unrotated) input, lane-dense
    # b_ref:    (COUT, 1)    bias as a column (lane-broadcast)
    # o_ref:    (COUT, M)    sigmoid(conv + b), lane-dense output
    y = jnp.dot(wT_ref[...], taps_ref[...], preferred_element_type=jnp.float32)
    o_ref[...] = jax.nn.sigmoid(y + b_ref[...])


def _conv_sigmoid(wT, taps, b_col):
    # Whole problem fits comfortably in VMEM: no grid, whole-array blocks.
    return pl.pallas_call(
        _conv_sigmoid_kernel,
        out_shape=jax.ShapeDtypeStruct((COUT, M), jnp.float32),
    )(wT, taps, b_col)


# ------------------------------- JAX glue -----------------------------------
def _build_taps_T(x_nchw):
    # im2col, transposed/lane-dense: (N, CIN, H, W) -> (9*CIN, N*H*W).
    # Row order is (tap di, tap dj, cin), matching w.reshape(9*CIN, COUT).
    xc = jnp.transpose(x_nchw, (1, 0, 2, 3))                  # (CIN, N, H, W)
    xp = jnp.pad(xc, ((0, 0), (0, 0), (1, 1), (1, 1)))
    taps = [xp[:, :, di:di + H, dj:dj + W].reshape(CIN, M)
            for di in range(KH) for dj in range(KW)]
    return jnp.concatenate(taps, axis=0)                      # (36, M)


@jax.jit
def four_rotations_forward(x_nchw, w_hwio, b):
    """FourRotations.forward: mean of model over 4 input rotations, activate.

    Collapsed via conv/rotation commutativity: since the model is a linear
    conv, sum_k rot90^{-k}(conv(rot90^k(x), w) + b) == conv(x, sum_k rot_k(w))
    + 4b, so out = sigmoid(conv(x, mean_k rot_k(w)) + b).
    """
    # Rotation-averaged weights (tiny 3x3x4x4 glue; set of 4 rotations is
    # direction-independent).
    w_avg = sum(jnp.rot90(w_hwio, k=k, axes=(0, 1)) for k in range(4)) / 4.0
    wT = w_avg.reshape(KTOT, COUT).T                          # (COUT, 36)

    taps = _build_taps_T(x_nchw)                              # (36, M)
    outT = _conv_sigmoid(wT, taps, b.reshape(COUT, 1))        # (COUT, M)

    out = outT.reshape(COUT, N, H, W)
    return jnp.transpose(out, (1, 0, 2, 3))                   # NCHW


# --------------------------- Pure-JAX reference ------------------------------
# Mirrors the torch module literally: model on 4 rotations, rotate back,
# sum, /4, sigmoid.
def _conv_ref(x_nchw, w_hwio, b):
    w_oihw = jnp.transpose(w_hwio, (3, 2, 0, 1))
    y = lax.conv_general_dilated(
        x_nchw, w_oihw, window_strides=(1, 1), padding=((1, 1), (1, 1)),
        dimension_numbers=('NCHW', 'OIHW', 'NCHW'))
    return y + b[None, :, None, None]


def four_rotations_ref(x_nchw, w_hwio, b):
    out = _conv_ref(x_nchw, w_hwio, b)
    for k in (1, 2, 3):
        out = out + jnp.rot90(
            _conv_ref(jnp.rot90(x_nchw, k=k, axes=(2, 3)), w_hwio, b),
            k=4 - k, axes=(2, 3))
    return jax.nn.sigmoid(out / 4.0)


# ---------------------------------- main -------------------------------------
if __name__ == "__main__":
    key = jax.random.PRNGKey(0)
    kx, kw, kb = jax.random.split(key, 3)
    # Deterministic example input (NCHW, like the PyTorch module) and params.
    x = jax.random.normal(kx, (N, CIN, H, W), jnp.float32)
    w = jax.random.normal(kw, (KH, KW, CIN, COUT), jnp.float32) * 0.1
    b = jax.random.normal(kb, (COUT,), jnp.float32) * 0.1

    out = jax.block_until_ready(four_rotations_forward(x, w, b))
    assert out.shape == (N, COUT, H, W)

    ref = four_rotations_ref(x, w, b)
    err = float(jnp.max(jnp.abs(out - ref)))
    # Different (but algebraically identical) accumulation order than the
    # 4-pass reference; f32 with K_eff=144 and a sigmoid keeps it far below.
    assert err < 1e-4, f"max abs err {err}"
    print("KERNEL_OK")
</pallas_src>

<mosaic_0001>
module attributes {stable_mosaic.version = 11 : i64} {
  func.func @_conv_sigmoid_kernel(%arg0: memref<4x36xf32, #tpu.memory_space<vmem>>, %arg1: memref<36x512xf32, #tpu.memory_space<vmem>>, %arg2: memref<4x1xf32, #tpu.memory_space<vmem>>, %arg3: memref<4x512xf32, #tpu.memory_space<vmem>>) attributes {dimension_semantics = [], scalar_prefetch = 0 : i64, scratch_operands = 0 : i64, tpu.core_type = #tpu.core_type<tc>} {
    %c0 = arith.constant 0 : index
    %c0_0 = arith.constant 0 : index
    %0 = vector.load %arg0[%c0, %c0_0] : memref<4x36xf32, #tpu.memory_space<vmem>>, vector<4x36xf32>
    %c0_1 = arith.constant 0 : index
    %c0_2 = arith.constant 0 : index
    %1 = vector.load %arg1[%c0_1, %c0_2] : memref<36x512xf32, #tpu.memory_space<vmem>>, vector<36x512xf32>
    %cst = arith.constant dense<0.000000e+00> : vector<4x512xf32>
    %2 = tpu.matmul %0, %1, %cst {dimension_numbers = #tpu.dot_dimension_numbers<[1], [0], [0], [1], [0, 0, 1, 1], [], []>} : vector<4x36xf32>, vector<36x512xf32>, vector<4x512xf32> -> vector<4x512xf32>
    %c0_3 = arith.constant 0 : index
    %c0_4 = arith.constant 0 : index
    %3 = vector.load %arg2[%c0_3, %c0_4] : memref<4x1xf32, #tpu.memory_space<vmem>>, vector<4x1xf32>
    %4 = vector.broadcast %3 : vector<4x1xf32> to vector<4x512xf32>
    %5 = arith.addf %2, %4 : vector<4x512xf32>
    %6 = arith.negf %5 : vector<4x512xf32>
    %7 = math.exp %6 : vector<4x512xf32>
    %cst_5 = arith.constant 1.000000e+00 : f32
    %8 = vector.broadcast %cst_5 : f32 to vector<4x512xf32>
    %9 = arith.addf %8, %7 : vector<4x512xf32>
    %10 = arith.divf %8, %9 : vector<4x512xf32>
    %c0_6 = arith.constant 0 : index
    %c0_7 = arith.constant 0 : index
    %11 = vector.load %arg3[%c0_6, %c0_7] : memref<4x512xf32, #tpu.memory_space<vmem>>, vector<4x512xf32>
    tpu.vector_store %arg3[%c0_6, %c0_7], %10 {strides = array<i32>} : memref<4x512xf32, #tpu.memory_space<vmem>>, vector<4x512xf32>,
    return
  }
}

</mosaic_0001>

<llo_original>
// kernel: four_rotations_forward.1
$region0: #{four_rotations_forward.1}
  #allocation0 [shape = 'u32[]', space=smem, size = 0x4, offset = 0x4, fixed_abs, tag = 'smem constant byte address 0x4 - core index']
  #allocation1 [shape = 'u32[144,128]{1,0:T(1,128)}', space=vmem, size = 0x12000, scoped, tag = 'internal scratch']
  %s0 = inlined_call_operand.vmem [shape: f32[4,36], index: 0, kind: input, shape index: {}]
  %s1 = inlined_call_operand.vmem [shape: f32[36,512], index: 1, kind: input, shape index: {}]
  %s2 = inlined_call_operand.vmem [shape: f32[4,1], index: 2, kind: input, shape index: {}]
  %s3 = inlined_call_operand.vmem [shape: f32[4,512], index: 3, kind: output, shape index: {}]
  %s4 = sld [smem:[#allocation0]]
  $region22: #{four_rotations_forward.1} parent=0
    _
  %s6 = ssub.s32 1, %s4
  %s7 = scalar_select 0, %s6, %s4
  // Predicated region
  $region2: #{four_rotations_forward.1} parent=0 // pred_check
    _
  $region3: #{four_rotations_forward.1} parent=0 // pred_check_branch
    %9 = sbr.rel (0) target = $region5
  $region4: #{four_rotations_forward.1} parent=0 // pred_region
    _
  $region5: #{four_rotations_forward.1} parent=0 // pred_fallthru
    _
  // Predicated region
  $region6: #{four_rotations_forward.1} parent=0 // pred_check
    _
  $region7: #{four_rotations_forward.1} parent=0 // pred_check_branch
    %11 = sbr.rel (0) target = $region9
  $region8: #{four_rotations_forward.1} parent=0 // pred_region
    _
  $region9: #{four_rotations_forward.1} parent=0 // pred_fallthru
    _
  // Predicated region
  $region10: #{four_rotations_forward.1} parent=0 // pred_check
    _
  $region11: #{four_rotations_forward.1} parent=0 // pred_check_branch
    %13 = sbr.rel (0) target = $region13
  $region12: #{four_rotations_forward.1} parent=0 // pred_region
    _
  $region13: #{four_rotations_forward.1} parent=0 // pred_fallthru
    _
  %v14 = vld [vmem:[%s0] sm:$0xf]
  %v15 = vld [vmem:[%s1] sm:$0xff]
  %v16 = vld [vmem:[%s1 + $0x8] sm:$0xff]
  %v17 = vld [vmem:[%s1 + $0x10] sm:$0xff]
  %v18 = vld [vmem:[%s1 + $0x18] sm:$0xff]
  %v19 = vld [vmem:[%s1 + $0x20] sm:$0xff]
  %v20 = vld [vmem:[%s1 + $0x28] sm:$0xff]
  %v21 = vld [vmem:[%s1 + $0x30] sm:$0xff]
  %v22 = vld [vmem:[%s1 + $0x38] sm:$0xff]
  %v23 = vld [vmem:[%s1 + $0x40] sm:$0xff]
  %v24 = vld [vmem:[%s1 + $0x48] sm:$0xff]
  %v25 = vld [vmem:[%s1 + $0x50] sm:$0xff]
  %v26 = vld [vmem:[%s1 + $0x58] sm:$0xff]
  %v27 = vld [vmem:[%s1 + $0x60] sm:$0xff]
  %v28 = vld [vmem:[%s1 + $0x68] sm:$0xff]
  %v29 = vld [vmem:[%s1 + $0x70] sm:$0xff]
  %v30 = vld [vmem:[%s1 + $0x78] sm:$0xff]
  %v31 = vld [vmem:[%s1 + $0x80] sm:$0xf]
  %v32 = vld [vmem:[%s1 + $0x88] sm:$0xf]
  %v33 = vld [vmem:[%s1 + $0x90] sm:$0xf]
  %v34 = vld [vmem:[%s1 + $0x98] sm:$0xf]
  %v35 = vld [vmem:[%s2] sm:$0xf]
  %37 = vset.pattern.permute.xlu0 0
  %38 = vperm.xlu0 %37, %v35
  %v39 = vpop.permute.xlu0 %38
  %vm41 = vcmask 293888
  %v43 = vsel %vm41, %v14, 0
  %vm45 = vcmask 1043456
  %v47 = vsel %vm45, %v31, 0
  %v50 = vsel %vm45, %v32, 0
  %v53 = vsel %vm45, %v33, 0
  %v56 = vsel %vm45, %v34, 0
  %58 = vmatprep.subr.mxu0 %v16
  %59 = vmatpush1.msra.mxu0 %v15
  %60 = vmatprep.subr.mxu0 %v20
  %61 = vmatpush1.msra.mxu0 %v19
  %62 = vmatprep.subr.mxu0 %v24
  %63 = vmatpush1.msra.mxu0 %v23
  %64 = vmatprep.subr.mxu0 %v28
  %65 = vmatpush1.msra.mxu0 %v27
  %66 = vmatprep.subr.mxu0 %v50
  %67 = vmatpush1.msra.mxu0 %v47
  %68 = vmatprep.subr.mxu0 0.0
  %69 = vmatpush1.msra.mxu0 0.0
  %70 = vmatprep.subr.mxu0 0.0
  %71 = vmatpush1.msra.mxu0 0.0
  %72 = vmatprep.subr.mxu0 0.0
  %73 = vmatpush1.msra.mxu0 0.0
  %74 = vmatprep.subr.mxu0 0.0
  %75 = vmatpush1.msra.mxu0 0.0
  %76 = vmatprep.subr.mxu0 0.0
  %77 = vmatpush1.msra.mxu0 0.0
  %78 = vmatprep.subr.mxu0 0.0
  %79 = vmatpush1.msra.mxu0 0.0
  %80 = vmatprep.subr.mxu0 0.0
  %81 = vmatpush1.msra.mxu0 0.0
  %82 = vmatprep.subr.mxu0 0.0
  %83 = vmatpush1.msra.mxu0 0.0
  %84 = vmatprep.subr.mxu0 0.0
  %85 = vmatpush1.msra.mxu0 0.0
  %86 = vmatprep.subr.mxu0 0.0
  %87 = vmatpush1.msra.mxu0 0.0
  %88 = vmatprep.subr.mxu0 0.0
  %89 = vmatpush1.msra.mxu0 0.0
  %90 = vmatprep.subr.mxu0 0.0
  %91 = vmatpush1.msra.mxu0 0.0
  %92 = vmatprep.subr.mxu0 0.0
  %93 = vmatpush1.msra.mxu0 0.0
  %94 = vmatprep.subr.mxu0 0.0
  %95 = vmatpush1.msra.mxu0 0.0
  %96 = vmatprep.subr.mxu0 0.0
  %97 = vmatpush1.msra.mxu0 0.0
  %98 = vmatprep.subr.mxu0 0.0
  %99 = vmatpush1.msra.mxu0 0.0
  %100 = vmatprep.subr.mxu0 0.0
  %101 = vmatpush1.msra.mxu0 0.0
  %102 = vmatprep.subr.mxu0 0.0
  %103 = vmatpush1.msra.mxu0 0.0
  %104 = vmatprep.subr.mxu0 0.0
  %105 = vmatpush1.msra.mxu0 0.0
  %106 = vmatprep.subr.mxu0 0.0
  %107 = vmatpush1.msra.mxu0 0.0
  %108 = vmatprep.subr.mxu0 0.0
  %109 = vmatpush1.msra.mxu0 0.0
  %110 = vmatprep.subr.mxu0 0.0
  %111 = vmatpush1.msra.mxu0 0.0
  %112 = vmatprep.subr.mxu0 0.0
  %113 = vmatpush1.msra.mxu0 0.0
  %114 = vmatprep.subr.mxu0 0.0
  %115 = vmatpush1.msra.mxu0 0.0
  %116 = vmatprep.subr.mxu0 0.0
  %117 = vmatpush1.msra.mxu0 0.0
  %118 = vmatprep.subr.mxu0 0.0
  %119 = vmatpush1.msra.mxu0 0.0
  %120 = vmatprep.subr.mxu0 0.0
  %121 = vmatpush1.msra.mxu0 0.0
  %122 = vmatprep.mubr.f32.mxu0 0.0
  %123 = vmatmul.mubr.f32.gmra.mrb[0].mxu0 %v43
  %v124 = vpop.f32.mrb[0].mxu0
  %v125 = vadd.f32 %v39, %v124
  %v126 = vpop.f32.mrb[0].mxu0
  %v127 = vadd.f32 %v39, %v126
  %128 = vdwg.mxu0
  %129 = vmatprep.subr.mxu0 %v18
  %130 = vmatpush1.msra.mxu0 %v17
  %131 = vmatprep.subr.mxu0 %v22
  %132 = vmatpush1.msra.mxu0 %v21
  %133 = vmatprep.subr.mxu0 %v26
  %134 = vmatpush1.msra.mxu0 %v25
  %135 = vmatprep.subr.mxu0 %v30
  %136 = vmatpush1.msra.mxu0 %v29
  %137 = vmatprep.subr.mxu0 %v56
  %138 = vmatpush1.msra.mxu0 %v53
  %139 = vmatprep.subr.mxu0 0.0
  %140 = vmatpush1.msra.mxu0 0.0
  %141 = vmatprep.subr.mxu0 0.0
  %142 = vmatpush1.msra.mxu0 0.0
  %143 = vmatprep.subr.mxu0 0.0
  %144 = vmatpush1.msra.mxu0 0.0
  %145 = vmatprep.subr.mxu0 0.0
  %146 = vmatpush1.msra.mxu0 0.0
  %147 = vmatprep.subr.mxu0 0.0
  %148 = vmatpush1.msra.mxu0 0.0
  %149 = vmatprep.subr.mxu0 0.0
  %150 = vmatpush1.msra.mxu0 0.0
  %151 = vmatprep.subr.mxu0 0.0
  %152 = vmatpush1.msra.mxu0 0.0
  %153 = vmatprep.subr.mxu0 0.0
  %154 = vmatpush1.msra.mxu0 0.0
  %155 = vmatprep.subr.mxu0 0.0
  %156 = vmatpush1.msra.mxu0 0.0
  %157 = vmatprep.subr.mxu0 0.0
  %158 = vmatpush1.msra.mxu0 0.0
  %159 = vmatprep.subr.mxu0 0.0
  %160 = vmatpush1.msra.mxu0 0.0
  %161 = vmatprep.subr.mxu0 0.0
  %162 = vmatpush1.msra.mxu0 0.0
  %163 = vmatprep.subr.mxu0 0.0
  %164 = vmatpush1.msra.mxu0 0.0
  %165 = vmatprep.subr.mxu0 0.0
  %166 = vmatpush1.msra.mxu0 0.0
  %167 = vmatprep.subr.mxu0 0.0
  %168 = vmatpush1.msra.mxu0 0.0
  %169 = vmatprep.subr.mxu0 0.0
  %170 = vmatpush1.msra.mxu0 0.0
  %171 = vmatprep.subr.mxu0 0.0
  %172 = vmatpush1.msra.mxu0 0.0
  %173 = vmatprep.subr.mxu0 0.0
  %174 = vmatpush1.msra.mxu0 0.0
  %175 = vmatprep.subr.mxu0 0.0
  %176 = vmatpush1.msra.mxu0 0.0
  %177 = vmatprep.subr.mxu0 0.0
  %178 = vmatpush1.msra.mxu0 0.0
  %179 = vmatprep.subr.mxu0 0.0
  %180 = vmatpush1.msra.mxu0 0.0
  %181 = vmatprep.subr.mxu0 0.0
  %182 = vmatpush1.msra.mxu0 0.0
  %183 = vmatprep.subr.mxu0 0.0
  %184 = vmatpush1.msra.mxu0 0.0
  %185 = vmatprep.subr.mxu0 0.0
  %186 = vmatpush1.msra.mxu0 0.0
  %187 = vmatprep.subr.mxu0 0.0
  %188 = vmatpush1.msra.mxu0 0.0
  %189 = vmatprep.subr.mxu0 0.0
  %190 = vmatpush1.msra.mxu0 0.0
  %191 = vmatprep.subr.mxu0 0.0
  %192 = vmatpush1.msra.mxu0 0.0
  %193 = vmatprep.mubr.f32.mxu0 0.0
  %194 = vmatmul.mubr.f32.gmra.mrb[0].mxu0 %v43
  %v195 = vpop.f32.mrb[0].mxu0
  %v196 = vadd.f32 %v39, %v195
  %v197 = vpop.f32.mrb[0].mxu0
  %v198 = vadd.f32 %v39, %v197
  %199 = vdwg.mxu0
  %v200 = vxor.u32 %v125, 2147483648
  %v201 = vxor.u32 %v127, 2147483648
  %v202 = vxor.u32 %v196, 2147483648
  %v203 = vxor.u32 %v198, 2147483648
  %v204 = vmul.f32 %v200, 1.442695
  %v205 = vpow.pop %v204
  %v206 = vmul.f32 %v201, 1.442695
  %v207 = vpow.pop %v206
  %v208 = vmul.f32 %v202, 1.442695
  %v209 = vpow.pop %v208
  %v210 = vmul.f32 %v203, 1.442695
  %v211 = vpow.pop %v210
  %v212 = vadd.f32 %v205, 1.0
  %v213 = vadd.f32 %v207, 1.0
  %v214 = vadd.f32 %v209, 1.0
  %v215 = vadd.f32 %v211, 1.0
  %v216 = vrcp.pop %v212
  %v217 = vmul.f32 1.0, %v216
  %v218 = vrcp.pop %v213
  %v219 = vmul.f32 1.0, %v218
  %v220 = vrcp.pop %v214
  %v221 = vmul.f32 1.0, %v220
  %v222 = vrcp.pop %v215
  %v223 = vmul.f32 1.0, %v222
  %v228 = vcombine.low %v217, %v219
  %v229 = vcombine.low %v221, %v223
  %232 = vst [vmem:[%s3] sm:$0xff] %v228
  %233 = vst [vmem:[%s3 + $0x8] sm:$0xff] %v229
  // Predicated region
  $region14: #{four_rotations_forward.1} parent=0 // pred_check
    _
  $region15: #{four_rotations_forward.1} parent=0 // pred_check_branch
    %235 = sbr.rel (0) target = $region17
  $region16: #{four_rotations_forward.1} parent=0 // pred_region
    _
  $region17: #{four_rotations_forward.1} parent=0 // pred_fallthru
    _
  // Predicated region
  $region18: #{four_rotations_forward.1} parent=0 // pred_check
    _
  $region19: #{four_rotations_forward.1} parent=0 // pred_check_branch
    %237 = sbr.rel (0) target = $region21
  $region20: #{four_rotations_forward.1} parent=0 // pred_region
    _
  $region21: #{four_rotations_forward.1} parent=0 // pred_fallthru
    _

</llo_original>
